<compile_context>
chip_gen: v7x
topology: tpu7x:2x2x1
jax: 0.10.0
libtpu: 0.0.40
codegen_flags: <defaults>
</compile_context>

<pallas_src>
import jax
import jax.numpy as jnp
from jax.experimental import pallas as pl
from jax.experimental.pallas import tpu as pltpu

_LANE = 128                       # output slab lane width (vreg lane dim)
_BLOCK_ROWS = 8192                # max rows per block: 8192*128*4B = 4 MiB
_SMALL_N_BYPASS_BYTES = 1 << 20   # below this output size, skip the kernel


def _round_up(x: int, m: int) -> int:
    return ((x + m - 1) // m) * m


def _variance_kernel(inv_s_ref, out_ref):
    # inv_s_ref: (1,) f32 in SMEM holding the precomputed exp(variance * 10).
    # out_ref:   (block_rows, 128) f32 block of the lane-dense output slab.
    out_ref[...] = jnp.full(out_ref.shape, inv_s_ref[0], dtype=out_ref.dtype)


def variance_network_forward(x, variance, *, use_kernel=None):
    """Pallas equivalent of VarianceNetwork.forward(x): (N, 1) filled with inv_s.

    use_kernel: None -> auto (bypass Pallas for small N); True/False -> force.
    """
    n = x.shape[0]

    # Scalar hot path hoisted out of the grid loop (one exp total).
    inv_s = jnp.exp(jnp.asarray(variance, dtype=jnp.float32) * 10.0)
    # TODO(synk): the optional `modulate` clamp (inv_s.clamp_max(mod_val)) is a
    # training-schedule feature driven by update_step(); not part of the
    # default (modulate=False) forward and thus omitted here.

    if n == 0:
        return jnp.zeros((0, 1), dtype=jnp.float32)

    if use_kernel is None:
        use_kernel = n * 4 >= _SMALL_N_BYPASS_BYTES
    if not use_kernel:
        # Zero-arithmetic-intensity op: let XLA fuse the broadcast into the
        # consumer instead of paying a kernel launch + 8N bytes of HBM traffic.
        return jnp.full((n, 1), inv_s, dtype=jnp.float32)

    # Lane-dense slab covering n elements, sublane-aligned (pad <= 1023 elems).
    rows = _round_up(pl.cdiv(n, _LANE), 8)

    # Block size: large blocks for big N; for medium N split into 2 blocks so
    # v7x's two TensorCores both get work under dimension_semantics=parallel.
    if rows <= _BLOCK_ROWS:
        block_rows = rows if rows <= 8 else _round_up(pl.cdiv(rows, 2), 8)
    else:
        block_rows = _BLOCK_ROWS
    grid = (pl.cdiv(rows, block_rows),)  # ragged final block handled by Pallas

    block_bytes = block_rows * _LANE * 4
    vmem_limit = 2 * block_bytes + (4 << 20)  # double-buffered output + headroom

    slab = pl.pallas_call(
        _variance_kernel,
        out_shape=jax.ShapeDtypeStruct((rows, _LANE), jnp.float32),
        grid=grid,
        in_specs=[pl.BlockSpec(memory_space=pltpu.MemorySpace.SMEM)],
        out_specs=pl.BlockSpec((block_rows, _LANE), lambda i: (i, 0)),
        compiler_params=pltpu.CompilerParams(
            dimension_semantics=("parallel",),  # shard row blocks across TCs
            vmem_limit_bytes=vmem_limit,        # safe on v5e's 16 MiB default
        ),
    )(inv_s.reshape(1))

    total = rows * _LANE
    if total == n:
        # Pure reshape (bitcast) — no extra HBM copy.
        return slab.reshape(n, 1)
    # Padding exists: slice away the (at most 1023-element) tail.
    return slab.reshape(-1)[:n].reshape(n, 1)


if __name__ == "__main__":
    key = jax.random.PRNGKey(0)

    # Deterministic parameter init, mirroring nn.Parameter(torch.tensor(init_val)).
    init_val = 0.3
    variance = jnp.float32(init_val)
    expected_inv_s = jnp.exp(variance * 10.0)

    # Case 1: tiny N (auto path -> fused jnp.full bypass).
    x1 = jax.random.normal(key, (8, 3), dtype=jnp.float32)
    out1 = jax.block_until_ready(variance_network_forward(x1, variance))
    ref1 = jnp.ones((8, 1), jnp.float32) * expected_inv_s
    assert out1.shape == (8, 1) and out1.dtype == jnp.float32
    assert jnp.allclose(out1, ref1, rtol=1e-6, atol=1e-6)

    # Case 2: N not divisible by 128 -> exercises the Pallas ragged/slice path.
    x2 = jax.random.normal(jax.random.PRNGKey(0), (300, 3), dtype=jnp.float32)
    out2 = jax.block_until_ready(
        variance_network_forward(x2, variance, use_kernel=True))
    ref2 = jnp.ones((300, 1), jnp.float32) * expected_inv_s
    assert out2.shape == (300, 1)
    assert jnp.allclose(out2, ref2, rtol=1e-6, atol=1e-6)

    # Case 3: N multiple of 1024 -> Pallas kernel, 2-block grid, reshape-only
    # (copy-free) return path.
    x3 = jax.random.normal(jax.random.PRNGKey(0), (4096, 3), dtype=jnp.float32)
    out3 = jax.block_until_ready(
        variance_network_forward(x3, variance, use_kernel=True))
    ref3 = jnp.ones((4096, 1), jnp.float32) * expected_inv_s
    assert out3.shape == (4096, 1)
    assert jnp.allclose(out3, ref3, rtol=1e-6, atol=1e-6)

    # Case 4: N = 0 edge case (guarded early return).
    x4 = jnp.zeros((0, 3), dtype=jnp.float32)
    out4 = jax.block_until_ready(variance_network_forward(x4, variance))
    assert out4.shape == (0, 1)

    print("KERNEL_OK")
</pallas_src>

<mosaic_0001>
module attributes {stable_mosaic.version = 11 : i64} {
  func.func @_variance_kernel(%arg0: i32, %arg1: memref<1xf32, #tpu.memory_space<smem>>, %arg2: memref<8x128xf32, #tpu.memory_space<vmem>>) attributes {dimension_semantics = [#tpu.dimension_semantics<parallel>], iteration_bounds = array<i64: 1>, scalar_prefetch = 0 : i64, scratch_operands = 0 : i64, tpu.core_type = #tpu.core_type<tc>, window_params = [{transform_indices = @transform_0, window_bounds = array<i64: 1>}, {transform_indices = @transform_1, window_bounds = array<i64: 8, 128>}]} {
    %c0 = arith.constant 0 : index
    %0 = memref.load %arg1[%c0] : memref<1xf32, #tpu.memory_space<smem>>
    %1 = vector.broadcast %0 : f32 to vector<8x128xf32>
    %c0_0 = arith.constant 0 : index
    %c0_1 = arith.constant 0 : index
    %2 = vector.load %arg2[%c0_0, %c0_1] : memref<8x128xf32, #tpu.memory_space<vmem>>, vector<8x128xf32>
    tpu.vector_store %arg2[%c0_0, %c0_1], %1 {strides = array<i32>} : memref<8x128xf32, #tpu.memory_space<vmem>>, vector<8x128xf32>,
    return
  }
  func.func @transform_0(%arg0: i32) -> i32 {
    %c0_i32 = arith.constant 0 : i32
    %c0_i32_0 = arith.constant 0 : i32
    return %c0_i32 : i32
  }
  func.func @transform_1(%arg0: i32) -> (i32, i32) {
    %c0_i32 = arith.constant 0 : i32
    %c0_i32_0 = arith.constant 0 : i32
    return %arg0, %c0_i32 : i32, i32
  }
}

</mosaic_0001>

<llo_original>
// kernel: tpu_custom_call.1
$region0: #{tpu_custom_call.1}
  #allocation0 [shape = 'u32[]', space=smem, size = 0x4, offset = 0x4, fixed_abs, tag = 'smem constant byte address 0x4 - core index']
  #allocation1 [shape = 'u32[144,128]{1,0:T(1,128)}', space=vmem, size = 0x12000, scoped, tag = 'internal scratch']
  #allocation2 [shape = 'f32[1]{0:T(128)S(6)}', space=smem, size = 0x200, scoped, tag = 'scoped memory for tpu_custom_call.1']
  %s0 = inlined_call_operand.<no memory space> [shape: f32[1], index: 0, kind: input, shape index: {}]
  %s1 = inlined_call_operand.hbm [shape: f32[8,128], index: 1, kind: output, shape index: {}]
  %s2 = sld [smem:[#allocation0]]
  $region14: #{tpu_custom_call.1} parent=0
    _
  %s4 = ssub.s32 1, %s2
  %s5 = scalar_select 0, %s4, %s2
  %6 = sst [smem:[#allocation2]] %s0
  $region1: #{tpu_custom_call.1} parent=0
    #allocation3 [shape = 'u8[4096]{0}', space=vmem, size = 0x1000, scoped, tag = 'output window, operand 0, single buffered']
    #allocation4 [shape = 's32[1]{0}', space=sflag, size = 0x4, scoped, tag = 'scoped memory for tpu_custom_call.1']
    %7 = vsyncpa [#allocation4], 0
    // Predicated region
    $region2: #{tpu_custom_call.1} parent=1 // pred_check
      _
    $region3: #{tpu_custom_call.1} parent=1 // pred_check_branch
      %9 = sbr.rel (0) target = $region5
    $region4: #{tpu_custom_call.1} parent=1 // pred_region
      _
    $region5: #{tpu_custom_call.1} parent=1 // pred_fallthru
      _
    %s10 = sld [smem:[#allocation2]]
    %v11 = vstv %s10
    %12 = vst [vmem:[#allocation3] sm:$0xff] %v11
    // Predicated region
    $region6: #{tpu_custom_call.1} parent=1 // pred_check
      _
    $region7: #{tpu_custom_call.1} parent=1 // pred_check_branch
      %14 = sbr.rel (0) target = $region9
    $region8: #{tpu_custom_call.1} parent=1 // pred_region
      %s16 = ssub.s32 128, 128
      %17 = vsyncadd [#allocation4], %s16
      %s19 = sshll.u32 [#allocation3], 4
      %s20 = int_to_ptr.vmem [resolvable:$true] %s19
      %22 = dma.vmem_to_hbm [thread:$0]  %s20, 128, %s1, [#allocation4]
    $region9: #{tpu_custom_call.1} parent=1 // pred_fallthru
      _
    // Predicated region
    $region10: #{tpu_custom_call.1} parent=1 // pred_check
      _
    $region11: #{tpu_custom_call.1} parent=1 // pred_check_branch
      %24 = sbr.rel (0) target = $region13
    $region12: #{tpu_custom_call.1} parent=1 // pred_region
      %25 = dma.done [#allocation4], 128
    $region13: #{tpu_custom_call.1} parent=1 // pred_fallthru
      _
    %26 = vsyncpa [#allocation4], 1

</llo_original>
